<compile_context>
chip_gen: v6e
topology: v6e:2x2x1
jax: 0.10.0
libtpu: 0.0.40
codegen_flags: <defaults>
</compile_context>

<pallas_src>
import functools

import jax
import jax.numpy as jnp
import numpy as np
from jax.experimental import pallas as pl
from jax.experimental.pallas import tpu as pltpu


# ----------------------------------------------------------------------------
# Kernel
# ----------------------------------------------------------------------------
def ffn_kernel(x_ref, w1_ref, b1_ref, w2_ref, b2_ref, o_ref, *, compute_dtype):
    """Per-tile FFN: out = W2 @ relu(W1 @ x + b1) + b2 (BN folded into W/b).

    x_ref : (Nb, ed, Tt) input tile in its native (f32) dtype; cast to the
                         compute dtype here, not in the wrapper.
    w1_ref: (h, ed)  compute dtype (bf16), resident across the grid
    b1_ref: (h, 1)   f32
    w2_ref: (ed, h)  compute dtype (bf16), resident across the grid
    b2_ref: (ed, 1)  f32
    o_ref : (Nb, ed, Tt) out_dtype
    """
    w1 = w1_ref[...]
    w2 = w2_ref[...]
    b1 = b1_ref[...]
    b2 = b2_ref[...]
    # Static unroll over the (small) per-block batch dim keeps every matmul a
    # plain lane-dense (channels x tokens) MXU op.
    for b in range(x_ref.shape[0]):
        x = x_ref[b].astype(compute_dtype)                          # (ed, Tt)
        hid = jnp.dot(w1, x, preferred_element_type=jnp.float32)    # (h, Tt)
        hid = jnp.maximum(hid + b1, 0.0).astype(compute_dtype)      # bias+ReLU f32 (VPU)
        out = jnp.dot(w2, hid, preferred_element_type=jnp.float32)  # (ed, Tt)
        o_ref[b] = (out + b2).astype(o_ref.dtype)


# ----------------------------------------------------------------------------
# Tiling helpers
# ----------------------------------------------------------------------------
def _round_up(x, m):
    return ((x + m - 1) // m) * m


def _choose_tiles(N, L_pad, tokens_target):
    """Pick (batch_tile, token_tile): token_tile is the largest 128-multiple
    dividing L_pad and <= tokens_target; then pack images if budget remains."""
    tt_max = max(128, min(tokens_target, L_pad))
    token_tile = 128
    for t in range(tt_max // 128, 0, -1):
        cand = t * 128
        if L_pad % cand == 0:
            token_tile = cand
            break
    batch_tile = 1
    want = max(1, tokens_target // token_tile)
    for nb in range(min(N, want), 0, -1):
        if N % nb == 0:
            batch_tile = nb
            break
    return batch_tile, token_tile


def _ensure_two_grid_steps(N, L_pad, batch_tile, token_tile):
    """v7x has 2 TensorCores; keep >=2 parallel grid steps when possible so
    both cores pull HBM concurrently for this bandwidth-bound kernel."""
    if (N // batch_tile) * (L_pad // token_tile) >= 2:
        return batch_tile, token_tile
    if L_pad // 128 >= 2:                      # prefer splitting the token axis
        for t in range(L_pad // 256, 0, -1):
            cand = t * 128
            if L_pad % cand == 0:
                return batch_tile, cand
    if batch_tile >= 2:                        # otherwise split the batch axis
        for nb in range(batch_tile // 2, 0, -1):
            if N % nb == 0:
                return nb, token_tile
    return batch_tile, token_tile


# ----------------------------------------------------------------------------
# Pallas wrapper
# ----------------------------------------------------------------------------
def ffn_pallas(x_ncl, w1, b1, w2, b2, *,
               compute_dtype=jnp.bfloat16,
               out_dtype=None,
               max_tokens_per_step=4096,
               vmem_tile_budget_bytes=8 * 1024 * 1024,
               token_tile=None, batch_tile=None,
               single_buffer_weights=False):
    """x_ncl: (N, ed, L) channel-first tokens.  Returns (N, ed, L) in
    out_dtype (default: x_ncl.dtype; pass jnp.bfloat16 to halve writeback)."""
    N, ed, L = x_ncl.shape
    h = w1.shape[0]
    out_dtype = x_ncl.dtype if out_dtype is None else out_dtype

    # Lane-dense tokens: pad the token axis to a multiple of 128 so stores are
    # full-width vst (no masked vst.msk) and tiles pipeline cleanly.
    L_pad = _round_up(L, 128)
    if L_pad != L:
        x_ncl = jnp.pad(x_ncl, ((0, 0), (0, 0), (0, L_pad - L)))

    in_item = jnp.dtype(x_ncl.dtype).itemsize
    out_item = jnp.dtype(out_dtype).itemsize
    c_item = jnp.dtype(compute_dtype).itemsize

    # Per-token VMEM cost: double-buffered I/O tiles + in-kernel intermediates
    # (bf16 copy of x, hid in f32+bf16, f32 out before cast).
    bytes_per_token = (2 * ed * in_item
                       + 2 * ed * out_item
                       + ed * c_item
                       + h * (4 + c_item)
                       + ed * 4)
    tokens_target = min(
        max_tokens_per_step,
        max(128, (vmem_tile_budget_bytes // bytes_per_token) // 128 * 128))

    if token_tile is None or batch_tile is None:
        bt, tt = _choose_tiles(N, L_pad, tokens_target)
        bt, tt = _ensure_two_grid_steps(N, L_pad, bt, tt)
        batch_tile = bt if batch_tile is None else batch_tile
        token_tile = tt if token_tile is None else token_tile
    assert L_pad % token_tile == 0 and N % batch_tile == 0, \
        (L_pad, token_tile, N, batch_tile)

    grid = (N // batch_tile, L_pad // token_tile)

    w1c = w1.astype(compute_dtype)
    w2c = w2.astype(compute_dtype)
    b1c = b1.reshape(h, 1).astype(jnp.float32)
    b2c = b2.reshape(ed, 1).astype(jnp.float32)

    # Resident operands (constant index_map).  Optionally single-buffer them to
    # reclaim VMEM at real EfficientViT widths (matters most on v7x's 64 MiB).
    w_mode = dict(pipeline_mode=pl.Buffered(1)) if single_buffer_weights else {}
    w_buffers = 1 if single_buffer_weights else 2

    vmem_est = (batch_tile * token_tile * bytes_per_token
                + w_buffers * ((h * ed + ed * h) * c_item + (h + ed) * 4))
    try:
        vmem_cap = int(pltpu.get_tpu_info().vmem_capacity_bytes)
    except Exception:
        vmem_cap = 64 * 1024 * 1024  # conservative: v7x per-TC VMEM
    # Always set the scoped limit (v5e's default is only 16 MiB); 2x headroom
    # over the estimate, capped at ~75% of physical VMEM.
    vmem_limit = int(min(max(2 * vmem_est, 32 * 1024 * 1024),
                         0.75 * vmem_cap))

    kernel = functools.partial(ffn_kernel, compute_dtype=compute_dtype)
    y = pl.pallas_call(
        kernel,
        out_shape=jax.ShapeDtypeStruct((N, ed, L_pad), out_dtype),
        grid_spec=pltpu.PrefetchScalarGridSpec(
            num_scalar_prefetch=0,
            grid=grid,
            in_specs=[
                pl.BlockSpec((batch_tile, ed, token_tile),
                             lambda n, t: (n, 0, t)),                 # x tile
                pl.BlockSpec((h, ed), lambda n, t: (0, 0), **w_mode),  # W1
                pl.BlockSpec((h, 1), lambda n, t: (0, 0), **w_mode),   # b1
                pl.BlockSpec((ed, h), lambda n, t: (0, 0), **w_mode),  # W2
                pl.BlockSpec((ed, 1), lambda n, t: (0, 0), **w_mode),  # b2
            ],
            out_specs=pl.BlockSpec((batch_tile, ed, token_tile),
                                   lambda n, t: (n, 0, t)),
        ),
        compiler_params=pltpu.CompilerParams(
            dimension_semantics=("parallel", "parallel"),
            vmem_limit_bytes=vmem_limit),
    )(x_ncl, w1c, b1c, w2c, b2c)

    if L_pad != L:
        y = y[:, :, :L]
    return y


# ----------------------------------------------------------------------------
# BN fusion + full forward (matches PyTorch FFN in eval mode)
# ----------------------------------------------------------------------------
def fuse_conv_bn(conv_w, gamma, beta, mean, var, eps=1e-5):
    """Fold BatchNorm2d (inference) into a bias-free 1x1 conv.
    conv_w: (out_c, in_c).  y[:, o, t] = sum_i W[o, i] * x[:, i, t] + b[o]."""
    scale = gamma / jnp.sqrt(var + eps)               # (out_c,)
    w = conv_w * scale[:, None]                       # (out_c, in_c)
    b = beta - mean * scale                           # (out_c,)
    return w, b


def ffn_forward(x_nchw, params, **kw):
    N, C, H, W = x_nchw.shape
    w1, b1 = fuse_conv_bn(params["pw1_w"], params["bn1_g"], params["bn1_b"],
                          params["bn1_m"], params["bn1_v"])
    w2, b2 = fuse_conv_bn(params["pw2_w"], params["bn2_g"], params["bn2_b"],
                          params["bn2_m"], params["bn2_v"])
    # NCHW is already channel-first: just flatten spatial dims (no transpose).
    x_ncl = x_nchw.reshape(N, C, H * W)
    y_ncl = ffn_pallas(x_ncl, w1, b1, w2, b2, **kw)
    return y_ncl.reshape(N, C, H, W)


def ffn_reference(x_nchw, params):
    """Pure-JAX f32 reference (same math, no Pallas, no bf16)."""
    N, C, H, W = x_nchw.shape
    w1, b1 = fuse_conv_bn(params["pw1_w"], params["bn1_g"], params["bn1_b"],
                          params["bn1_m"], params["bn1_v"])
    w2, b2 = fuse_conv_bn(params["pw2_w"], params["bn2_g"], params["bn2_b"],
                          params["bn2_m"], params["bn2_v"])
    x = x_nchw.reshape(N, C, H * W)
    hid = jnp.maximum(jnp.einsum("oi,nil->nol", w1, x) + b1[None, :, None], 0.0)
    y = jnp.einsum("oi,nil->nol", w2, hid) + b2[None, :, None]
    return y.reshape(N, C, H, W)


def make_params(key, ed, h):
    ks = jax.random.split(key, 8)
    # Conv2d weights (out, in, 1, 1) stored squeezed as (out, in).
    pw1_w = jax.random.normal(ks[0], (h, ed), jnp.float32) * 0.1
    pw2_w = jax.random.normal(ks[1], (ed, h), jnp.float32) * 0.1
    # Non-trivial BN params / running stats so the fused-BN path is exercised.
    bn1_g = 1.0 + 0.1 * jax.random.normal(ks[2], (h,), jnp.float32)
    bn1_b = 0.1 * jax.random.normal(ks[3], (h,), jnp.float32)
    bn1_m = 0.1 * jax.random.normal(ks[4], (h,), jnp.float32)
    bn1_v = jnp.abs(jax.random.normal(ks[5], (h,), jnp.float32)) + 0.5
    bn2_g = 0.5 + 0.1 * jax.random.normal(ks[6], (ed,), jnp.float32)
    bn2_b = 0.1 * jax.random.normal(ks[7], (ed,), jnp.float32)
    bn2_m = jnp.zeros((ed,), jnp.float32)
    bn2_v = jnp.ones((ed,), jnp.float32)
    return dict(pw1_w=pw1_w, pw2_w=pw2_w,
                bn1_g=bn1_g, bn1_b=bn1_b, bn1_m=bn1_m, bn1_v=bn1_v,
                bn2_g=bn2_g, bn2_b=bn2_b, bn2_m=bn2_m, bn2_v=bn2_v)


if __name__ == "__main__":
    key = jax.random.PRNGKey(0)
    kx, kx2, kp = jax.random.split(key, 3)

    N, ed, h = 2, 16, 32
    params = make_params(kp, ed, h)

    # Case 1: 32x32 spatial -> 1024 tokens/image (L % 128 == 0, no padding;
    # auto-tiling keeps >=2 parallel grid steps for v7x's 2 TensorCores).
    x = jax.random.normal(kx, (N, ed, 32, 32), jnp.float32)   # NCHW like PyTorch
    y = jax.block_until_ready(jax.jit(ffn_forward)(x, params))
    assert y.shape == x.shape, (y.shape, x.shape)
    # bf16 MXU operands with f32 accumulation -> loosened tolerance vs f32 ref.
    np.testing.assert_allclose(np.asarray(y), np.asarray(ffn_reference(x, params)),
                               rtol=2e-2, atol=2e-2)

    # Case 2: 7x7 spatial -> 49 tokens/image (exercises the pad-to-128 +
    # small-L batched-tile path used by late-stage EfficientViT blocks).
    x2 = jax.random.normal(kx2, (N, ed, 7, 7), jnp.float32)
    y2 = jax.block_until_ready(jax.jit(ffn_forward)(x2, params))
    assert y2.shape == x2.shape, (y2.shape, x2.shape)
    np.testing.assert_allclose(np.asarray(y2), np.asarray(ffn_reference(x2, params)),
                               rtol=2e-2, atol=2e-2)

    print("KERNEL_OK")
</pallas_src>

<mosaic_0001>
module attributes {stable_mosaic.version = 11 : i64} {
  func.func @ffn_kernel(%arg0: i32, %arg1: i32, %arg2: memref<2x16x512xf32, #tpu.memory_space<vmem>>, %arg3: memref<32x16xbf16, #tpu.memory_space<vmem>>, %arg4: memref<32x1xf32, #tpu.memory_space<vmem>>, %arg5: memref<16x32xbf16, #tpu.memory_space<vmem>>, %arg6: memref<16x1xf32, #tpu.memory_space<vmem>>, %arg7: memref<2x16x512xf32, #tpu.memory_space<vmem>>) attributes {dimension_semantics = [#tpu.dimension_semantics<parallel>, #tpu.dimension_semantics<parallel>], iteration_bounds = array<i64: 1, 2>, scalar_prefetch = 0 : i64, scratch_operands = 0 : i64, tpu.core_type = #tpu.core_type<tc>, window_params = [{transform_indices = @transform_0, window_bounds = array<i64: 2, 16, 512>}, {pipeline_mode = #tpu.pipeline_mode<synchronous>, transform_indices = @transform_1, window_bounds = array<i64: 32, 16>}, {pipeline_mode = #tpu.pipeline_mode<synchronous>, transform_indices = @transform_2, window_bounds = array<i64: 32, 1>}, {pipeline_mode = #tpu.pipeline_mode<synchronous>, transform_indices = @transform_3, window_bounds = array<i64: 16, 32>}, {pipeline_mode = #tpu.pipeline_mode<synchronous>, transform_indices = @transform_4, window_bounds = array<i64: 16, 1>}, {transform_indices = @transform_5, window_bounds = array<i64: 2, 16, 512>}]} {
    %c0 = arith.constant 0 : index
    %c0_0 = arith.constant 0 : index
    %0 = vector.load %arg3[%c0, %c0_0] : memref<32x16xbf16, #tpu.memory_space<vmem>>, vector<32x16xbf16>
    %c0_1 = arith.constant 0 : index
    %c0_2 = arith.constant 0 : index
    %1 = vector.load %arg5[%c0_1, %c0_2] : memref<16x32xbf16, #tpu.memory_space<vmem>>, vector<16x32xbf16>
    %c0_3 = arith.constant 0 : index
    %c0_4 = arith.constant 0 : index
    %2 = vector.load %arg4[%c0_3, %c0_4] : memref<32x1xf32, #tpu.memory_space<vmem>>, vector<32x1xf32>
    %c0_5 = arith.constant 0 : index
    %c0_6 = arith.constant 0 : index
    %3 = vector.load %arg6[%c0_5, %c0_6] : memref<16x1xf32, #tpu.memory_space<vmem>>, vector<16x1xf32>
    %c0_7 = arith.constant 0 : index
    %c0_8 = arith.constant 0 : index
    %c0_9 = arith.constant 0 : index
    %4 = vector.load %arg2[%c0_7, %c0_8, %c0_9] : memref<2x16x512xf32, #tpu.memory_space<vmem>>, vector<1x16x512xf32>
    %5 = vector.shape_cast %4 : vector<1x16x512xf32> to vector<16x512xf32>
    %6 = arith.truncf %5 : vector<16x512xf32> to vector<16x512xbf16>
    %cst = arith.constant dense<0.000000e+00> : vector<32x512xf32>
    %7 = tpu.matmul %0, %6, %cst {dimension_numbers = #tpu.dot_dimension_numbers<[1], [0], [0], [1], [0, 0, 1, 1], [], []>} : vector<32x16xbf16>, vector<16x512xbf16>, vector<32x512xf32> -> vector<32x512xf32>
    %8 = vector.broadcast %2 : vector<32x1xf32> to vector<32x512xf32>
    %9 = arith.addf %7, %8 : vector<32x512xf32>
    %cst_10 = arith.constant 0.000000e+00 : f32
    %10 = vector.broadcast %cst_10 : f32 to vector<32x512xf32>
    %11 = arith.maximumf %9, %10 : vector<32x512xf32>
    %12 = arith.truncf %11 : vector<32x512xf32> to vector<32x512xbf16>
    %cst_11 = arith.constant dense<0.000000e+00> : vector<16x512xf32>
    %13 = tpu.matmul %1, %12, %cst_11 {dimension_numbers = #tpu.dot_dimension_numbers<[1], [0], [0], [1], [0, 0, 1, 1], [], []>} : vector<16x32xbf16>, vector<32x512xbf16>, vector<16x512xf32> -> vector<16x512xf32>
    %14 = vector.broadcast %3 : vector<16x1xf32> to vector<16x512xf32>
    %15 = arith.addf %13, %14 : vector<16x512xf32>
    %c0_12 = arith.constant 0 : index
    %c0_13 = arith.constant 0 : index
    %c0_14 = arith.constant 0 : index
    %16 = vector.load %arg7[%c0_12, %c0_13, %c0_14] : memref<2x16x512xf32, #tpu.memory_space<vmem>>, vector<1x16x512xf32>
    %17 = vector.shape_cast %16 : vector<1x16x512xf32> to vector<16x512xf32>
    %18 = vector.shape_cast %15 : vector<16x512xf32> to vector<1x16x512xf32>
    tpu.vector_store %arg7[%c0_12, %c0_13, %c0_14], %18 {strides = array<i32>} : memref<2x16x512xf32, #tpu.memory_space<vmem>>, vector<1x16x512xf32>,
    %c1 = arith.constant 1 : index
    %c0_15 = arith.constant 0 : index
    %c0_16 = arith.constant 0 : index
    %19 = vector.load %arg2[%c1, %c0_15, %c0_16] : memref<2x16x512xf32, #tpu.memory_space<vmem>>, vector<1x16x512xf32>
    %20 = vector.shape_cast %19 : vector<1x16x512xf32> to vector<16x512xf32>
    %21 = arith.truncf %20 : vector<16x512xf32> to vector<16x512xbf16>
    %cst_17 = arith.constant dense<0.000000e+00> : vector<32x512xf32>
    %22 = tpu.matmul %0, %21, %cst_17 {dimension_numbers = #tpu.dot_dimension_numbers<[1], [0], [0], [1], [0, 0, 1, 1], [], []>} : vector<32x16xbf16>, vector<16x512xbf16>, vector<32x512xf32> -> vector<32x512xf32>
    %23 = vector.broadcast %2 : vector<32x1xf32> to vector<32x512xf32>
    %24 = arith.addf %22, %23 : vector<32x512xf32>
    %cst_18 = arith.constant 0.000000e+00 : f32
    %25 = vector.broadcast %cst_18 : f32 to vector<32x512xf32>
    %26 = arith.maximumf %24, %25 : vector<32x512xf32>
    %27 = arith.truncf %26 : vector<32x512xf32> to vector<32x512xbf16>
    %cst_19 = arith.constant dense<0.000000e+00> : vector<16x512xf32>
    %28 = tpu.matmul %1, %27, %cst_19 {dimension_numbers = #tpu.dot_dimension_numbers<[1], [0], [0], [1], [0, 0, 1, 1], [], []>} : vector<16x32xbf16>, vector<32x512xbf16>, vector<16x512xf32> -> vector<16x512xf32>
    %29 = vector.broadcast %3 : vector<16x1xf32> to vector<16x512xf32>
    %30 = arith.addf %28, %29 : vector<16x512xf32>
    %c1_20 = arith.constant 1 : index
    %c0_21 = arith.constant 0 : index
    %c0_22 = arith.constant 0 : index
    %31 = vector.load %arg7[%c1_20, %c0_21, %c0_22] : memref<2x16x512xf32, #tpu.memory_space<vmem>>, vector<1x16x512xf32>
    %32 = vector.shape_cast %31 : vector<1x16x512xf32> to vector<16x512xf32>
    %33 = vector.shape_cast %30 : vector<16x512xf32> to vector<1x16x512xf32>
    tpu.vector_store %arg7[%c1_20, %c0_21, %c0_22], %33 {strides = array<i32>} : memref<2x16x512xf32, #tpu.memory_space<vmem>>, vector<1x16x512xf32>,
    return
  }
  func.func @transform_0(%arg0: i32, %arg1: i32) -> (i32, i32, i32) {
    %c0_i32 = arith.constant 0 : i32
    %c0_i32_0 = arith.constant 0 : i32
    return %arg0, %c0_i32, %arg1 : i32, i32, i32
  }
  func.func @transform_1(%arg0: i32, %arg1: i32) -> (i32, i32) {
    %c0_i32 = arith.constant 0 : i32
    %c0_i32_0 = arith.constant 0 : i32
    %c0_i32_1 = arith.constant 0 : i32
    return %c0_i32, %c0_i32_0 : i32, i32
  }
  func.func @transform_2(%arg0: i32, %arg1: i32) -> (i32, i32) {
    %c0_i32 = arith.constant 0 : i32
    %c0_i32_0 = arith.constant 0 : i32
    %c0_i32_1 = arith.constant 0 : i32
    return %c0_i32, %c0_i32_0 : i32, i32
  }
  func.func @transform_3(%arg0: i32, %arg1: i32) -> (i32, i32) {
    %c0_i32 = arith.constant 0 : i32
    %c0_i32_0 = arith.constant 0 : i32
    %c0_i32_1 = arith.constant 0 : i32
    return %c0_i32, %c0_i32_0 : i32, i32
  }
  func.func @transform_4(%arg0: i32, %arg1: i32) -> (i32, i32) {
    %c0_i32 = arith.constant 0 : i32
    %c0_i32_0 = arith.constant 0 : i32
    %c0_i32_1 = arith.constant 0 : i32
    return %c0_i32, %c0_i32_0 : i32, i32
  }
  func.func @transform_5(%arg0: i32, %arg1: i32) -> (i32, i32, i32) {
    %c0_i32 = arith.constant 0 : i32
    %c0_i32_0 = arith.constant 0 : i32
    return %arg0, %c0_i32, %arg1 : i32, i32, i32
  }
}

</mosaic_0001>

<llo_original>
// kernel: ffn_forward.1
$region0: #{ffn_forward.1}
  #allocation0 [shape = 'u32[]', space=smem, size = 0x4, offset = 0x4, fixed_abs, tag = 'smem constant byte address 0x4 - core index']
  #allocation1 [shape = 'u32[144,128]{1,0:T(1,128)}', space=vmem, size = 0x12000, scoped, tag = 'internal scratch']
  %s0 = inlined_call_operand.vmem [shape: f32[2,16,1024], index: 0, kind: input, shape index: {}]
  %s1 = inlined_call_operand.vmem [shape: bf16[32,16], index: 1, kind: input, shape index: {}]
  %s2 = inlined_call_operand.vmem [shape: f32[32,1], index: 2, kind: input, shape index: {}]
  %s3 = inlined_call_operand.vmem [shape: bf16[16,32], index: 3, kind: input, shape index: {}]
  %s4 = inlined_call_operand.vmem [shape: f32[16,1], index: 4, kind: input, shape index: {}]
  %s5 = inlined_call_operand.vmem [shape: f32[2,16,1024], index: 5, kind: output, shape index: {}]
  %s6 = sld [smem:[#allocation0]]
  $region95: #{ffn_forward.1} parent=0
    _
  %s8 = ssub.s32 1, %s6
  %s9 = scalar_select 0, %s8, %s6
  $region1: #{ffn_forward.1} parent=0
    #allocation2 [shape = 'u8[131072]{0}', space=vmem, size = 0x20000, scoped, tag = 'input window, operand 0']
    #allocation3 [shape = 'u8[131072]{0}', space=vmem, size = 0x20000, scoped, tag = 'output window, operand 0']
    loop: start=0, step=1, limit=4
    $region2: #{ffn_forward.1} parent=1 // loop_pre_header
      _
    $region3: #{ffn_forward.1} parent=1 // loop_header
      %s11 = sphi 0, %s15
      %p12 = scmp.ge.s32.totalorder %s11, 4
      %s18 = sphi 0, %s30
      %s19 = sphi 0, %s26
      %s20 = sphi 0, %s18
      %s21 = sphi 0, %s19
      %s22 = sphi 0, %s20
      %s23 = sphi 0, %s21
      %s35 = sphi 0, %s37
      %s38 = sphi 0, %s35
      %s39 = sphi 0, %s38
      %s55 = sphi 0, %s39
      %s59 = sphi 0, %s59
      %s61 = sphi 0, %s59
      %s62 = sphi 0, %s61
      %s76 = sphi 0, %s62
      %s80 = sphi 0, %s80
      %s82 = sphi 0, %s80
      %s83 = sphi 0, %s82
      %s97 = sphi 0, %s83
      %s101 = sphi 0, %s101
      %s103 = sphi 0, %s101
      %s104 = sphi 0, %s103
      %s118 = sphi 0, %s104
      %s122 = sphi 0, %s122
      %s124 = sphi 0, %s122
      %s125 = sphi 0, %s124
      %s139 = sphi 0, %s125
      %s147 = sphi 0, %s149
      %s150 = sphi 0, %s147
      %s151 = sphi 0, %s150
      %s167 = sphi 0, %s151
    $region4: #{ffn_forward.1} parent=1 // loop_header_branch
      %14 = sbr.rel (%p12) target = $region8
    $region5: #{ffn_forward.1} parent=1 // loop_body
      %s16 = ssub.s32 %s11, 1
      %s17 = ssub.s32 %s11, 2
      %s24 = sadd.s32 1, %s19
      %p25 = scmp.ge.s32.totalorder %s24, 2
      %s26 = scalar_select %p25, 0, %s24
      %s27 = sadd.s32 1, %s18
      %s28 = scalar_select %p25, %s27, %s18
      %p29 = scmp.ge.s32.totalorder %s28, 1
      %s30 = scalar_select %p29, 0, %s28
      %s31 = ssub.s32 %s18, %s30
      %s32 = ssub.s32 %s19, %s26
      %s33 = sor.u32 %s31, %s32
      %p34 = scmp.eq.s32.totalorder %s33, 0
      %s36 = sadd.s32 %s35, 1
      %s37 = scalar_select %p34, %s35, %s36
      %p40 = pneg %p34
      %p41 = scmp.eq.s32.totalorder %s11, 1
      %p42 = por %p40, %p41
      %p43 = scmp.ne.s32.totalorder %s35, %s38
      %p44 = scmp.eq.s32.totalorder %s11, 0
      %p45 = por %p43, %p44
      %p46 = scmp.ne.s32.totalorder %s35, %s38
      %p47 = scmp.eq.s32.totalorder %s16, 1
      %p48 = por %p46, %p47
      %p49 = scmp.ne.s32.totalorder %s38, %s39
      %p50 = scmp.eq.s32.totalorder %s16, 0
      %p51 = por %p49, %p50
      %p52 = scmp.ne.s32.totalorder %s38, %s39
      %p53 = scmp.eq.s32.totalorder %s17, 1
      %p54 = por %p52, %p53
      %p56 = scmp.ne.s32.totalorder %s39, %s55
      %p57 = scmp.eq.s32.totalorder %s17, 0
      %p58 = por %p56, %p57
      %s60 = sadd.s32 %s59, 1
      %p63 = scmp.eq.s32.totalorder %s11, 1
      %p64 = scmp.ne.s32.totalorder %s59, %s61
      %p65 = scmp.eq.s32.totalorder %s11, 0
      %p66 = por %p64, %p65
      %p67 = scmp.ne.s32.totalorder %s59, %s61
      %p68 = scmp.eq.s32.totalorder %s16, 1
      %p69 = por %p67, %p68
      %p70 = scmp.ne.s32.totalorder %s61, %s62
      %p71 = scmp.eq.s32.totalorder %s16, 0
      %p72 = por %p70, %p71
      %p73 = scmp.ne.s32.totalorder %s61, %s62
      %p74 = scmp.eq.s32.totalorder %s17, 1
      %p75 = por %p73, %p74
      %p77 = scmp.ne.s32.totalorder %s62, %s76
      %p78 = scmp.eq.s32.totalorder %s17, 0
      %p79 = por %p77, %p78
      %s81 = sadd.s32 %s80, 1
      %p84 = scmp.eq.s32.totalorder %s11, 1
      %p85 = scmp.ne.s32.totalorder %s80, %s82
      %p86 = scmp.eq.s32.totalorder %s11, 0
      %p87 = por %p85, %p86
      %p88 = scmp.ne.s32.totalorder %s80, %s82
      %p89 = scmp.eq.s32.totalorder %s16, 1
      %p90 = por %p88, %p89
      %p91 = scmp.ne.s32.totalorder %s82, %s83
      %p92 = scmp.eq.s32.totalorder %s16, 0
      %p93 = por %p91, %p92
      %p94 = scmp.ne.s32.totalorder %s82, %s83
      %p95 = scmp.eq.s32.totalorder %s17, 1
      %p96 = por %p94, %p95
      %p98 = scmp.ne.s32.totalorder %s83, %s97
      %p99 = scmp.eq.s32.totalorder %s17, 0
      %p100 = por %p98, %p99
      %s102 = sadd.s32 %s101, 1
      %p105 = scmp.eq.s32.totalorder %s11, 1
      %p106 = scmp.ne.s32.totalorder %s101, %s103
      %p107 = scmp.eq.s32.totalorder %s11, 0
      %p108 = por %p106, %p107
      %p109 = scmp.ne.s32.totalorder %s101, %s103
      %p110 = scmp.eq.s32.totalorder %s16, 1
      %p111 = por %p109, %p110
      %p112 = scmp.ne.s32.totalorder %s103, %s104
      %p113 = scmp.eq.s32.totalorder %s16, 0
      %p114 = por %p112, %p113
      %p115 = scmp.ne.s32.totalorder %s103, %s104
      %p116 = scmp.eq.s32.totalorder %s17, 1
      %p117 = por %p115, %p116
      %p119 = scmp.ne.s32.totalorder %s104, %s118
      %p120 = scmp.eq.s32.totalorder %s17, 0
      %p121 = por %p119, %p120
      %s123 = sadd.s32 %s122, 1
      %p126 = scmp.eq.s32.totalorder %s11, 1
      %p127 = scmp.ne.s32.totalorder %s122, %s124
      %p128 = scmp.eq.s32.totalorder %s11, 0
      %p129 = por %p127, %p128
      %p130 = scmp.ne.s32.totalorder %s122, %s124
      %p131 = scmp.eq.s32.totalorder %s16, 1
      %p132 = por %p130, %p131
      %p133 = scmp.ne.s32.totalorder %s124, %s125
      %p134 = scmp.eq.s32.totalorder %s16, 0
      %p135 = por %p133, %p134
      %p136 = scmp.ne.s32.totalorder %s124, %s125
      %p137 = scmp.eq.s32.totalorder %s17, 1
      %p138 = por %p136, %p137
      %p140 = scmp.ne.s32.totalorder %s125, %s139
      %p141 = scmp.eq.s32.totalorder %s17, 0
      %p142 = por %p140, %p141
      %s143 = ssub.s32 %s18, %s30
      %s144 = ssub.s32 %s19, %s26
      %s145 = sor.u32 %s143, %s144
      %p146 = scmp.eq.s32.totalorder %s145, 0
      %s148 = sadd.s32 %s147, 1
      %s149 = scalar_select %p146, %s147, %s148
      %p152 = pneg %p146
      %p153 = scmp.eq.s32.totalorder %s11, 1
      %p154 = por %p152, %p153
      %p155 = scmp.ne.s32.totalorder %s147, %s150
      %p156 = scmp.eq.s32.totalorder %s11, 0
      %p157 = por %p155, %p156
      %p158 = scmp.ne.s32.totalorder %s147, %s150
      %p159 = scmp.eq.s32.totalorder %s16, 1
      %p160 = por %p158, %p159
      %p161 = scmp.ne.s32.totalorder %s150, %s151
      %p162 = scmp.eq.s32.totalorder %s16, 0
      %p163 = por %p161, %p162
      %p164 = scmp.ne.s32.totalorder %s150, %s151
      %p165 = scmp.eq.s32.totalorder %s17, 1
      %p166 = por %p164, %p165
      %p168 = scmp.ne.s32.totalorder %s151, %s167
      %p169 = scmp.eq.s32.totalorder %s17, 0
      %p170 = por %p168, %p169
      %p171 = scmp.le.s32.totalorder 1, %s11
      %p172 = scmp.lt.s32.totalorder %s11, 3
      %p173 = pnand %p171, %p172
      %p174 = pneg %p173
      // Predicated region
      $region9: #{ffn_forward.1} parent=5 // pred_check
        _
      $region10: #{ffn_forward.1} parent=5 // pred_check_branch
        %176 = sbr.rel (%p173) target = $region12
      $region11: #{ffn_forward.1} parent=5 // pred_region
        %s177 = ssub.s32 %s11, 1
        // Predicated region
        $region13: #{ffn_forward.1} parent=11 // pred_check
          %p178 = pneg %p72
        $region14: #{ffn_forward.1} parent=11 // pred_check_branch
          %180 = sbr.rel (%p178) target = $region16
        $region15: #{ffn_forward.1} parent=11 // pred_region
          _
        $region16: #{ffn_forward.1} parent=11 // pred_fallthru
          _
        // Predicated region
        $region17: #{ffn_forward.1} parent=11 // pred_check
          %p181 = pneg %p93
        $region18: #{ffn_forward.1} parent=11 // pred_check_branch
          %183 = sbr.rel (%p181) target = $region20
        $region19: #{ffn_forward.1} parent=11 // pred_region
          _
        $region20: #{ffn_forward.1} parent=11 // pred_fallthru
          _
        // Predicated region
        $region21: #{ffn_forward.1} parent=11 // pred_check
          %p184 = pneg %p114
        $region22: #{ffn_forward.1} parent=11 // pred_check_branch
          %186 = sbr.rel (%p184) target = $region24
        $region23: #{ffn_forward.1} parent=11 // pred_region
          _
        $region24: #{ffn_forward.1} parent=11 // pred_fallthru
          _
        // Predicated region
        $region25: #{ffn_forward.1} parent=11 // pred_check
          %p187 = pneg %p135
        $region26: #{ffn_forward.1} parent=11 // pred_check_branch
          %189 = sbr.rel (%p187) target = $region28
        $region27: #{ffn_forward.1} parent=11 // pred_region
          _
        $region28: #{ffn_forward.1} parent=11 // pred_fallthru
          _
      $region12: #{ffn_forward.1} parent=5 // pred_fallthru
        _
      %p190 = scmp.lt.s32.totalorder %s11, 2
      // Predicated region
      $region29: #{ffn_forward.1} parent=5 // pred_check
        %p191 = pneg %p190
      $region30: #{ffn_forward.1} parent=5 // pred_check_branch
        %193 = sbr.rel (%p191) target = $region32
      $region31: #{ffn_forward.1} parent=5 // pred_region
        // Predicated region
        $region33: #{ffn_forward.1} parent=31 // pred_check
          %p194 = pneg %p45
        $region34: #{ffn_forward.1} parent=31 // pred_check_branch
          %196 = sbr.rel (%p194) target = $region36
        $region35: #{ffn_forward.1} parent=31 // pred_region
          %s197 = sand.u32 %s35, 1
          %s198 = sand.u32 %s35, 1
          %s199 = smul.addr %s198, 128
          %s200 = scalar_lea.vmem [#allocation2], %s199
          %s201 = smul.u32 2, %s18
          %s202 = smul.u32 4, %s19
          %s203 = smul.addr %s201, 16
          %s204 = sadd.s32 %s202, %s203
          %s205 = smul.addr %s204, 8
          %s206 = scalar_lea.vmem %s0, %s205
          // Predicated region
          $region37: #{ffn_forward.1} parent=35 // pred_check
            _
          $region38: #{ffn_forward.1} parent=35 // pred_check_branch
            %208 = sbr.rel (0) target = $region40
          $region39: #{ffn_forward.1} parent=35 // pred_region
            // Predicated region
            $region41: #{ffn_forward.1} parent=39 // pred_check
              _
            $region42: #{ffn_forward.1} parent=39 // pred_check_branch
              %210 = sbr.rel (0) target = $region44
            $region43: #{ffn_forward.1} parent=39 // pred_region
              loop: start=0, step=1, limit=1
              $region45: #{ffn_forward.1} parent=43 // loop_pre_header
                _
              $region46: #{ffn_forward.1} parent=43 // loop_header
                %s212 = sphi 0, %s216
                %p213 = scmp.ge.s32.totalorder %s212, 1
                %s217 = sphi %s206, %s206
                %s218 = sphi %s200, %s200
              $region47: #{ffn_forward.1} parent=43 // loop_header_branch
                %215 = sbr.rel (%p213) target = $region51
              $region48: #{ffn_forward.1} parent=43 // loop_body
                %v219 = vld [vmem:[%s217] sm:$0xff]
                %220 = vst [vmem:[%s218] sm:$0xff] %v219
                %v221 = vld [vmem:[%s217 + $0x8] sm:$0xff]
                %222 = vst [vmem:[%s218 + $0x8] sm:$0xff] %v221
                %v223 = vld [vmem:[%s217 + $0x10] sm:$0xff]
                %224 = vst [vmem:[%s218 + $0x10] sm:$0xff] %v223
                %v225 = vld [vmem:[%s217 + $0x18] sm:$0xff]
                %226 = vst [vmem:[%s218 + $0x18] sm:$0xff] %v225
                %v227 = vld [vmem:[%s217 + $0x40] sm:$0xff]
                %228 = vst [vmem:[%s218 + $0x20] sm:$0xff] %v227
                %v229 = vld [vmem:[%s217 + $0x48] sm:$0xff]
                %230 = vst [vmem:[%s218 + $0x28] sm:$0xff] %v229
                %v231 = vld [vmem:[%s217 + $0x50] sm:$0xff]
                %232 = vst [vmem:[%s218 + $0x30] sm:$0xff] %v231
                %v233 = vld [vmem:[%s217 + $0x58] sm:$0xff]
                %234 = vst [vmem:[%s218 + $0x38] sm:$0xff] %v233
                %v235 = vld [vmem:[%s217 + $0x80] sm:$0xff]
                %236 = vst [vmem:[%s218 + $0x40] sm:$0xff] %v235
                %v237 = vld [vmem:[%s217 + $0x88] sm:$0xff]
                %238 = vst [vmem:[%s218 + $0x48] sm:$0xff] %v237
                %v239 = vld [vmem:[%s217 + $0x90] sm:$0xff]
                %240 = vst [vmem:[%s218 + $0x50] sm:$0xff] %v239
                %v241 = vld [vmem:[%s217 + $0x98] sm:$0xff]
                %242 = vst [vmem:[%s218 + $0x58] sm:$0xff] %v241
                %v243 = vld [vmem:[%s217 + $0xc0] sm:$0xff]
                %244 = vst [vmem:[%s218 + $0x60] sm:$0xff] %v243
                %v245 = vld [vmem:[%s217 + $0xc8] sm:$0xff]
                %246 = vst [vmem:[%s218 + $0x68] sm:$0xff] %v245
                %v247 = vld [vmem:[%s217 + $0xd0] sm:$0xff]
                %248 = vst [vmem:[%s218 + $0x70] sm:$0xff] %v247
                %v249 = vld [vmem:[%s217 + $0xd8] sm:$0xff]
                %250 = vst [vmem:[%s218 + $0x78] sm:$0xff] %v249
              $region49: #{ffn_forward.1} parent=43 // loop_footer
                %s216 = sadd.s32 1, %s212
              $region50: #{ffn_forward.1} parent=43 // loop_footer_branch
                %211 = sbr.rel target = $region46
              $region51: #{ffn_forward.1} parent=43 // loop_exit
                _
            $region44: #{ffn_forward.1} parent=39 // pred_fallthru
              _
            // Predicated region
            $region52: #{ffn_forward.1} parent=39 // pred_check
              _
            $region53: #{ffn_forward.1} parent=39 // pred_check_branch
              %252 = sbr.rel target = $region55
            $region54: #{ffn_forward.1} parent=39 // pred_region
              _
            $region55: #{ffn_forward.1} parent=39 // pred_fallthru
              _
          $region40: #{ffn_forward.1} parent=35 // pred_fallthru
            _
          %253 = vnop
        $region36: #{ffn_forward.1} parent=31 // pred_fallthru
          _
      $region32: #{ffn_forward.1} parent=5 // pred_fallthru
        _
      %p254 = scmp.le.s32.totalorder 1, %s11
      %p255 = scmp.lt.s32.totalorder %s11, 3
      %p256 = pnand %p254, %p255
      %p257 = pneg %p256
      // Predicated region
      $region56: #{ffn_forward.1} parent=5 // pred_check
        _
      $region57: #{ffn_forward.1} parent=5 // pred_check_branch
        %259 = sbr.rel (%p256) target = $region59
      $region58: #{ffn_forward.1} parent=5 // pred_region
        %s260 = ssub.s32 %s11, 1
        %s261 = sand.u32 %s38, 1
        %s262 = sand.u32 %s38, 1
        %s263 = smul.addr %s262, 128
        %s264 = scalar_lea.vmem [#allocation2], %s263
        // Predicated region
        $region60: #{ffn_forward.1} parent=58 // pred_check
          %p265 = pneg %p51
        $region61: #{ffn_forward.1} parent=58 // pred_check_branch
          %267 = sbr.rel (%p265) target = $region63
        $region62: #{ffn_forward.1} parent=58 // pred_region
          _
        $region63: #{ffn_forward.1} parent=58 // pred_fallthru
          _
        %s268 = sand.u32 %s38, 1
        %s269 = sand.u32 %s38, 1
        %s270 = smul.addr %s269, 128
        %s271 = scalar_lea.vmem [#allocation2], %s270
        %p272 = pneg %p51
        %p273 = pneg %p48
        %p274 = pneg %p72
        %p275 = pneg %p69
        %p276 = pneg %p93
        %p277 = pneg %p90
        %p278 = pneg %p114
        %p279 = pneg %p111
        %p280 = pneg %p135
        %p281 = pneg %p132
        %p282 = pneg %p163
        %p283 = pneg %p160
        %s284 = sand.u32 %s150, 1
        %s285 = sand.u32 %s150, 1
        %s286 = smul.addr %s285, 128
        %s287 = scalar_lea.vmem [#allocation3], %s286
        %s288 = smul.u32 2, %s20
        %s289 = smul.u32 4, %s21
        %s290 = smul.u32 2, %s20
        %s291 = smul.u32 4, %s21
        %v293 = vld [vmem:[%s1] sm:$0xf]
        %v294 = vld [vmem:[%s1 + $0x4] sm:$0xf]
        %v295 = vld [vmem:[%s1 + $0x8] sm:$0xf]
        %v296 = vld [vmem:[%s1 + $0xc] sm:$0xf]
        %v297 = vld [vmem:[%s3] sm:$0xf]
        %v298 = vld [vmem:[%s3 + $0x4] sm:$0xf]
        %v299 = vld [vmem:[%s2] sm:$0xff]
        %v300 = vld [vmem:[%s2 + $0x8] sm:$0xff]
        %v301 = vld [vmem:[%s2 + $0x10] sm:$0xff]
        %v302 = vld [vmem:[%s2 + $0x18] sm:$0xff]
        %v303 = vld [vmem:[%s4] sm:$0xff]
        %v304 = vld [vmem:[%s4 + $0x8] sm:$0xff]
        %v305 = vld [vmem:[%s264] sm:$0xff]
        %v306 = vld [vmem:[%s264 + $0x8] sm:$0xff]
        %v307 = vld [vmem:[%s264 + $0x10] sm:$0xff]
        %v308 = vld [vmem:[%s264 + $0x18] sm:$0xff]
        %v309 = vld [vmem:[%s264 + $0x20] sm:$0xff]
        %v310 = vld [vmem:[%s264 + $0x28] sm:$0xff]
        %v311 = vld [vmem:[%s264 + $0x30] sm:$0xff]
        %v312 = vld [vmem:[%s264 + $0x38] sm:$0xff]
        %v313 = vpack.c.bf16 %v309, %v305
        %v314 = vpack.c.bf16 %v310, %v306
        %v315 = vpack.c.bf16 %v311, %v307
        %v316 = vpack.c.bf16 %v312, %v308
        %318 = vset.pattern.permute.xlu0 0
        %319 = vperm.xlu0 %318, %v299
        %v320 = vpop.permute.xlu0 %319
        %323 = vset.pattern.permute.xlu0 0
        %324 = vperm.xlu0 %323, %v300
        %v325 = vpop.permute.xlu0 %324
        %328 = vset.pattern.permute.xlu0 0
        %329 = vperm.xlu0 %328, %v301
        %v330 = vpop.permute.xlu0 %329
        %333 = vset.pattern.permute.xlu0 0
        %334 = vperm.xlu0 %333, %v302
        %v335 = vpop.permute.xlu0 %334
        %v341 = vunpack.c.l.b16 %v293
        %v342 = vunpack.c.l.b16 %v294
        %v343 = vunpack.c.l.b16 %v295
        %v344 = vunpack.c.l.b16 %v296
        %v345 = vpack.c.b16 %v342, %v341
        %v346 = vpack.c.b16 %v344, %v343
        %vm347 = vcmask 130048
        %v349 = vsel %vm347, %v345, 0
        %v352 = vsel %vm347, %v346, 0
        %354 = vmatprep.subr.bf16.mxu0 0
        %355 = vmatpush1.bf16.msra.mxu0 0
        %356 = vmatprep.subr.bf16.mxu0 0
        %357 = vmatpush1.bf16.msra.mxu0 0
        %358 = vmatprep.subr.bf16.mxu0 0
        %359 = vmatpush1.bf16.msra.mxu0 0
        %360 = vmatprep.subr.bf16.mxu0 0
        %361 = vmatpush1.bf16.msra.mxu0 0
        %362 = vmatprep.subr.bf16.mxu0 0
        %363 = vmatpush1.bf16.msra.mxu0 0
        %364 = vmatprep.subr.bf16.mxu0 0
        %365 = vmatpush1.bf16.msra.mxu0 0
        %366 = vmatprep.subr.bf16.mxu0 0
        %367 = vmatpush1.bf16.msra.mxu0 0
        %368 = vmatprep.subr.bf16.mxu0 %v314
        %369 = vmatpush1.bf16.msra.mxu0 %v313
        %370 = vmatprep.subr.bf16.mxu0 0
        %371 = vmatpush2.bf16.msra.mxu0 0
        %372 = vmatprep.subr.bf16.mxu0 0
        %373 = vmatpush2.bf16.msra.mxu0 0
        %374 = vmatprep.subr.bf16.mxu0 0
        %375 = vmatpush2.bf16.msra.mxu0 0
        %376 = vmatprep.subr.bf16.mxu0 0
        %377 = vmatpush2.bf16.msra.mxu0 0
        %378 = vmatprep.subr.bf16.mxu0 0
        %379 = vmatpush2.bf16.msra.mxu0 0
        %380 = vmatprep.subr.bf16.mxu0 0
        %381 = vmatpush2.bf16.msra.mxu0 0
        %382 = vmatprep.subr.bf16.mxu0 0
        %383 = vmatpush2.bf16.msra.mxu0 0
        %384 = vmatprep.subr.bf16.mxu0 0
        %385 = vmatpush2.bf16.msra.mxu0 0
        %386 = vmatprep.mubr.bf16.mxu0 0
        %387 = vmatmul.mubr.bf16.gmra.mxu0 %v349
        %v388 = vpop.f32.mrf.mxu0
        %v389 = vadd.f32 %v320, %v388
        %v390 = vpop.f32.mrf.mxu0
        %v391 = vadd.f32 %v320, %v390
        %v392 = vpop.f32.mrf.mxu0
        %v393 = vadd.f32 %v325, %v392
        %v394 = vpop.f32.mrf.mxu0
        %v395 = vadd.f32 %v325, %v394
        %396 = vmatprep.mubr.bf16.mxu0 0
        %397 = vmatmul.mubr.bf16.gmra.mxu0 %v352
        %v398 = vpop.f32.mrf.mxu0
        %v399 = vadd.f32 %v330, %v398
        %v400 = vpop.f32.mrf.mxu0
        %v401 = vadd.f32 %v330, %v400
        %v402 = vpop.f32.mrf.mxu0
        %v403 = vadd.f32 %v335, %v402
        %v404 = vpop.f32.mrf.mxu0
        %v405 = vadd.f32 %v335, %v404
        %406 = vdwg.mxu0
        %407 = vmatprep.subr.bf16.mxu0 0
        %408 = vmatpush1.bf16.msra.mxu0 0
        %409 = vmatprep.subr.bf16.mxu0 0
        %410 = vmatpush1.bf16.msra.mxu0 0
        %411 = vmatprep.subr.bf16.mxu0 0
        %412 = vmatpush1.bf16.msra.mxu0 0
        %413 = vmatprep.subr.bf16.mxu0 0
        %414 = vmatpush1.bf16.msra.mxu0 0
        %415 = vmatprep.subr.bf16.mxu0 0
        %416 = vmatpush1.bf16.msra.mxu0 0
        %417 = vmatprep.subr.bf16.mxu0 0
        %418 = vmatpush1.bf16.msra.mxu0 0
        %419 = vmatprep.subr.bf16.mxu0 0
        %420 = vmatpush1.bf16.msra.mxu0 0
        %421 = vmatprep.subr.bf16.mxu0 %v316
        %422 = vmatpush1.bf16.msra.mxu0 %v315
        %423 = vmatprep.subr.bf16.mxu0 0
        %424 = vmatpush2.bf16.msra.mxu0 0
        %425 = vmatprep.subr.bf16.mxu0 0
        %426 = vmatpush2.bf16.msra.mxu0 0
        %427 = vmatprep.subr.bf16.mxu0 0
        %428 = vmatpush2.bf16.msra.mxu0 0
        %429 = vmatprep.subr.bf16.mxu0 0
        %430 = vmatpush2.bf16.msra.mxu0 0
        %431 = vmatprep.subr.bf16.mxu0 0
        %432 = vmatpush2.bf16.msra.mxu0 0
        %433 = vmatprep.subr.bf16.mxu0 0
        %434 = vmatpush2.bf16.msra.mxu0 0
        %435 = vmatprep.subr.bf16.mxu0 0
        %436 = vmatpush2.bf16.msra.mxu0 0
        %437 = vmatprep.subr.bf16.mxu0 0
        %438 = vmatpush2.bf16.msra.mxu0 0
        %439 = vmatprep.mubr.bf16.mxu0 0
        %440 = vmatmul.mubr.bf16.gmra.mxu0 %v349
        %v441 = vpop.f32.mrf.mxu0
        %v442 = vadd.f32 %v320, %v441
        %v443 = vpop.f32.mrf.mxu0
        %v444 = vadd.f32 %v320, %v443
        %v445 = vpop.f32.mrf.mxu0
        %v446 = vadd.f32 %v325, %v445
        %v447 = vpop.f32.mrf.mxu0
        %v448 = vadd.f32 %v325, %v447
        %449 = vmatprep.mubr.bf16.mxu0 0
        %450 = vmatmul.mubr.bf16.gmra.mxu0 %v352
        %v451 = vpop.f32.mrf.mxu0
        %v452 = vadd.f32 %v330, %v451
        %v453 = vpop.f32.mrf.mxu0
        %v454 = vadd.f32 %v330, %v453
        %v455 = vpop.f32.mrf.mxu0
        %v456 = vadd.f32 %v335, %v455
        %v457 = vpop.f32.mrf.mxu0
        %v458 = vadd.f32 %v335, %v457
        %459 = vdwg.mxu0
        %v460 = vmax.f32 %v389, 0.0
        %v461 = vmax.f32 %v391, 0.0
        %v462 = vmax.f32 %v442, 0.0
        %v463 = vmax.f32 %v444, 0.0
        %v464 = vmax.f32 %v393, 0.0
        %v465 = vmax.f32 %v395, 0.0
        %v466 = vmax.f32 %v446, 0.0
        %v467 = vmax.f32 %v448, 0.0
        %v468 = vmax.f32 %v399, 0.0
        %v469 = vmax.f32 %v401, 0.0
        %v470 = vmax.f32 %v452, 0.0
        %v471 = vmax.f32 %v454, 0.0
        %v472 = vmax.f32 %v403, 0.0
        %v473 = vmax.f32 %v405, 0.0
        %v474 = vmax.f32 %v456, 0.0
        %v475 = vmax.f32 %v458, 0.0
        %v476 = vpack.c.bf16 %v464, %v460
        %v477 = vpack.c.bf16 %v465, %v461
        %v478 = vpack.c.bf16 %v466, %v462
        %v479 = vpack.c.bf16 %v467, %v463
        %v480 = vpack.c.bf16 %v472, %v468
        %v481 = vpack.c.bf16 %v473, %v469
        %v482 = vpack.c.bf16 %v474, %v470
        %v483 = vpack.c.bf16 %v475, %v471
        %485 = vset.pattern.permute.xlu0 0
        %486 = vperm.xlu0 %485, %v303
        %v487 = vpop.permute.xlu0 %486
        %490 = vset.pattern.permute.xlu0 0
        %491 = vperm.xlu0 %490, %v304
        %v492 = vpop.permute.xlu0 %491
        %v496 = vunpack.c.l.b16 %v297
        %v497 = vunpack.c.l.b16 %v298
        %v498 = vpack.c.b16 %v497, %v496
        %vm499 = vcmask 261120
        %v501 = vsel %vm499, %v498, 0
        %503 = vmatprep.subr.bf16.mxu0 0
        %504 = vmatpush1.bf16.msra.mxu0 0
        %505 = vmatprep.subr.bf16.mxu0 0
        %506 = vmatpush1.bf16.msra.mxu0 0
        %507 = vmatprep.subr.bf16.mxu0 0
        %508 = vmatpush1.bf16.msra.mxu0 0
        %509 = vmatprep.subr.bf16.mxu0 0
        %510 = vmatpush1.bf16.msra.mxu0 0
        %511 = vmatprep.subr.bf16.mxu0 0
        %512 = vmatpush1.bf16.msra.mxu0 0
        %513 = vmatprep.subr.bf16.mxu0 0
        %514 = vmatpush1.bf16.msra.mxu0 0
        %515 = vmatprep.subr.bf16.mxu0 %v481
        %516 = vmatpush1.bf16.msra.mxu0 %v480
        %517 = vmatprep.subr.bf16.mxu0 %v477
        %518 = vmatpush1.bf16.msra.mxu0 %v476
        %519 = vmatprep.subr.bf16.mxu0 0
        %520 = vmatpush2.bf16.msra.mxu0 0
        %521 = vmatprep.subr.bf16.mxu0 0
        %522 = vmatpush2.bf16.msra.mxu0 0
        %523 = vmatprep.subr.bf16.mxu0 0
        %524 = vmatpush2.bf16.msra.mxu0 0
        %525 = vmatprep.subr.bf16.mxu0 0
        %526 = vmatpush2.bf16.msra.mxu0 0
        %527 = vmatprep.subr.bf16.mxu0 0
        %528 = vmatpush2.bf16.msra.mxu0 0
        %529 = vmatprep.subr.bf16.mxu0 0
        %530 = vmatpush2.bf16.msra.mxu0 0
        %531 = vmatprep.subr.bf16.mxu0 0
        %532 = vmatpush2.bf16.msra.mxu0 0
        %533 = vmatprep.subr.bf16.mxu0 0
        %534 = vmatpush2.bf16.msra.mxu0 0
        %535 = vmatprep.mubr.bf16.mxu0 0
        %536 = vmatmul.mubr.bf16.gmra.mxu0 %v501
        %v537 = vpop.f32.mrf.mxu0
        %v538 = vadd.f32 %v487, %v537
        %v539 = vpop.f32.mrf.mxu0
        %v540 = vadd.f32 %v487, %v539
        %v541 = vpop.f32.mrf.mxu0
        %v542 = vadd.f32 %v492, %v541
        %v543 = vpop.f32.mrf.mxu0
        %v544 = vadd.f32 %v492, %v543
        %545 = vdwg.mxu0
        %546 = vmatprep.subr.bf16.mxu0 0
        %547 = vmatpush1.bf16.msra.mxu0 0
        %548 = vmatprep.subr.bf16.mxu0 0
        %549 = vmatpush1.bf16.msra.mxu0 0
        %550 = vmatprep.subr.bf16.mxu0 0
        %551 = vmatpush1.bf16.msra.mxu0 0
        %552 = vmatprep.subr.bf16.mxu0 0
        %553 = vmatpush1.bf16.msra.mxu0 0
        %554 = vmatprep.subr.bf16.mxu0 0
        %555 = vmatpush1.bf16.msra.mxu0 0
        %556 = vmatprep.subr.bf16.mxu0 0
        %557 = vmatpush1.bf16.msra.mxu0 0
        %558 = vmatprep.subr.bf16.mxu0 %v483
        %559 = vmatpush1.bf16.msra.mxu0 %v482
        %560 = vmatprep.subr.bf16.mxu0 %v479
        %561 = vmatpush1.bf16.msra.mxu0 %v478
        %562 = vmatprep.subr.bf16.mxu0 0
        %563 = vmatpush2.bf16.msra.mxu0 0
        %564 = vmatprep.subr.bf16.mxu0 0
        %565 = vmatpush2.bf16.msra.mxu0 0
        %566 = vmatprep.subr.bf16.mxu0 0
        %567 = vmatpush2.bf16.msra.mxu0 0
        %568 = vmatprep.subr.bf16.mxu0 0
        %569 = vmatpush2.bf16.msra.mxu0 0
        %570 = vmatprep.subr.bf16.mxu0 0
        %571 = vmatpush2.bf16.msra.mxu0 0
        %572 = vmatprep.subr.bf16.mxu0 0
        %573 = vmatpush2.bf16.msra.mxu0 0
        %574 = vmatprep.subr.bf16.mxu0 0
        %575 = vmatpush2.bf16.msra.mxu0 0
        %576 = vmatprep.subr.bf16.mxu0 0
        %577 = vmatpush2.bf16.msra.mxu0 0
        %578 = vmatprep.mubr.bf16.mxu0 0
        %579 = vmatmul.mubr.bf16.gmra.mxu0 %v501
        %v580 = vpop.f32.mrf.mxu0
        %v581 = vadd.f32 %v487, %v580
        %v582 = vpop.f32.mrf.mxu0
        %v583 = vadd.f32 %v487, %v582
        %v584 = vpop.f32.mrf.mxu0
        %v585 = vadd.f32 %v492, %v584
        %v586 = vpop.f32.mrf.mxu0
        %v587 = vadd.f32 %v492, %v586
        %588 = vdwg.mxu0
        %589 = vst [vmem:[%s287] sm:$0xff] %v538
        %590 = vst [vmem:[%s287 + $0x8] sm:$0xff] %v540
        %591 = vst [vmem:[%s287 + $0x10] sm:$0xff] %v581
        %592 = vst [vmem:[%s287 + $0x18] sm:$0xff] %v583
        %593 = vst [vmem:[%s287 + $0x20] sm:$0xff] %v542
        %594 = vst [vmem:[%s287 + $0x28] sm:$0xff] %v544
        %595 = vst [vmem:[%s287 + $0x30] sm:$0xff] %v585
        %596 = vst [vmem:[%s287 + $0x38] sm:$0xff] %v587
        %s597 = scalar_lea.vmem %s264, 64 [#allocation2]
        %v598 = vld [vmem:[%s597] sm:$0xff]
        %v599 = vld [vmem:[%s597 + $0x8] sm:$0xff]
        %v600 = vld [vmem:[%s597 + $0x10] sm:$0xff]
        %v601 = vld [vmem:[%s597 + $0x18] sm:$0xff]
        %v602 = vld [vmem:[%s597 + $0x20] sm:$0xff]
        %v603 = vld [vmem:[%s597 + $0x28] sm:$0xff]
        %v604 = vld [vmem:[%s597 + $0x30] sm:$0xff]
        %v605 = vld [vmem:[%s597 + $0x38] sm:$0xff]
        %v606 = vpack.c.bf16 %v602, %v598
        %v607 = vpack.c.bf16 %v603, %v599
        %v608 = vpack.c.bf16 %v604, %v600
        %v609 = vpack.c.bf16 %v605, %v601
        %610 = vmatprep.subr.bf16.mxu0 0
        %611 = vmatpush1.bf16.msra.mxu0 0
        %612 = vmatprep.subr.bf16.mxu0 0
        %613 = vmatpush1.bf16.msra.mxu0 0
        %614 = vmatprep.subr.bf16.mxu0 0
        %615 = vmatpush1.bf16.msra.mxu0 0
        %616 = vmatprep.subr.bf16.mxu0 0
        %617 = vmatpush1.bf16.msra.mxu0 0
        %618 = vmatprep.subr.bf16.mxu0 0
        %619 = vmatpush1.bf16.msra.mxu0 0
        %620 = vmatprep.subr.bf16.mxu0 0
        %621 = vmatpush1.bf16.msra.mxu0 0
        %622 = vmatprep.subr.bf16.mxu0 0
        %623 = vmatpush1.bf16.msra.mxu0 0
        %624 = vmatprep.subr.bf16.mxu0 %v607
        %625 = vmatpush1.bf16.msra.mxu0 %v606
        %626 = vmatprep.subr.bf16.mxu0 0
        %627 = vmatpush2.bf16.msra.mxu0 0
        %628 = vmatprep.subr.bf16.mxu0 0
        %629 = vmatpush2.bf16.msra.mxu0 0
        %630 = vmatprep.subr.bf16.mxu0 0
        %631 = vmatpush2.bf16.msra.mxu0 0
        %632 = vmatprep.subr.bf16.mxu0 0
        %633 = vmatpush2.bf16.msra.mxu0 0
        %634 = vmatprep.subr.bf16.mxu0 0
        %635 = vmatpush2.bf16.msra.mxu0 0
        %636 = vmatprep.subr.bf16.mxu0 0
        %637 = vmatpush2.bf16.msra.mxu0 0
        %638 = vmatprep.subr.bf16.mxu0 0
        %639 = vmatpush2.bf16.msra.mxu0 0
        %640 = vmatprep.subr.bf16.mxu0 0
        %641 = vmatpush2.bf16.msra.mxu0 0
        %642 = vmatprep.mubr.bf16.mxu0 0
        %643 = vmatmul.mubr.bf16.gmra.mxu0 %v349
        %v644 = vpop.f32.mrf.mxu0
        %v645 = vadd.f32 %v320, %v644
        %v646 = vpop.f32.mrf.mxu0
        %v647 = vadd.f32 %v320, %v646
        %v648 = vpop.f32.mrf.mxu0
        %v649 = vadd.f32 %v325, %v648
        %v650 = vpop.f32.mrf.mxu0
        %v651 = vadd.f32 %v325, %v650
        %652 = vmatprep.mubr.bf16.mxu0 0
        %653 = vmatmul.mubr.bf16.gmra.mxu0 %v352
        %v654 = vpop.f32.mrf.mxu0
        %v655 = vadd.f32 %v330, %v654
        %v656 = vpop.f32.mrf.mxu0
        %v657 = vadd.f32 %v330, %v656
        %v658 = vpop.f32.mrf.mxu0
        %v659 = vadd.f32 %v335, %v658
        %v660 = vpop.f32.mrf.mxu0
        %v661 = vadd.f32 %v335, %v660
        %662 = vdwg.mxu0
        %663 = vmatprep.subr.bf16.mxu0 0
        %664 = vmatpush1.bf16.msra.mxu0 0
        %665 = vmatprep.subr.bf16.mxu0 0
        %666 = vmatpush1.bf16.msra.mxu0 0
        %667 = vmatprep.subr.bf16.mxu0 0
        %668 = vmatpush1.bf16.msra.mxu0 0
        %669 = vmatprep.subr.bf16.mxu0 0
        %670 = vmatpush1.bf16.msra.mxu0 0
        %671 = vmatprep.subr.bf16.mxu0 0
        %672 = vmatpush1.bf16.msra.mxu0 0
        %673 = vmatprep.subr.bf16.mxu0 0
        %674 = vmatpush1.bf16.msra.mxu0 0
        %675 = vmatprep.subr.bf16.mxu0 0
        %676 = vmatpush1.bf16.msra.mxu0 0
        %677 = vmatprep.subr.bf16.mxu0 %v609
        %678 = vmatpush1.bf16.msra.mxu0 %v608
        %679 = vmatprep.subr.bf16.mxu0 0
        %680 = vmatpush2.bf16.msra.mxu0 0
        %681 = vmatprep.subr.bf16.mxu0 0
        %682 = vmatpush2.bf16.msra.mxu0 0
        %683 = vmatprep.subr.bf16.mxu0 0
        %684 = vmatpush2.bf16.msra.mxu0 0
        %685 = vmatprep.subr.bf16.mxu0 0
        %686 = vmatpush2.bf16.msra.mxu0 0
        %687 = vmatprep.subr.bf16.mxu0 0
        %688 = vmatpush2.bf16.msra.mxu0 0
        %689 = vmatprep.subr.bf16.mxu0 0
        %690 = vmatpush2.bf16.msra.mxu0 0
        %691 = vmatprep.subr.bf16.mxu0 0
        %692 = vmatpush2.bf16.msra.mxu0 0
        %693 = vmatprep.subr.bf16.mxu0 0
        %694 = vmatpush2.bf16.msra.mxu0 0
        %695 = vmatprep.mubr.bf16.mxu0 0
        %696 = vmatmul.mubr.bf16.gmra.mxu0 %v349
        %v697 = vpop.f32.mrf.mxu0
        %v698 = vadd.f32 %v320, %v697
        %v699 = vpop.f32.mrf.mxu0
        %v700 = vadd.f32 %v320, %v699
        %v701 = vpop.f32.mrf.mxu0
        %v702 = vadd.f32 %v325, %v701
        %v703 = vpop.f32.mrf.mxu0
        %v704 = vadd.f32 %v325, %v703
        %705 = vmatprep.mubr.bf16.mxu0 0
        %706 = vmatmul.mubr.bf16.gmra.mxu0 %v352
        %v707 = vpop.f32.mrf.mxu0
        %v708 = vadd.f32 %v330, %v707
        %v709 = vpop.f32.mrf.mxu0
        %v710 = vadd.f32 %v330, %v709
        %v711 = vpop.f32.mrf.mxu0
        %v712 = vadd.f32 %v335, %v711
        %v713 = vpop.f32.mrf.mxu0
        %v714 = vadd.f32 %v335, %v713
        %715 = vdwg.mxu0
        %v716 = vmax.f32 %v645, 0.0
        %v717 = vmax.f32 %v647, 0.0
        %v718 = vmax.f32 %v698, 0.0
        %v719 = vmax.f32 %v700, 0.0
        %v720 = vmax.f32 %v649, 0.0
        %v721 = vmax.f32 %v651, 0.0
        %v722 = vmax.f32 %v702, 0.0
        %v723 = vmax.f32 %v704, 0.0
        %v724 = vmax.f32 %v655, 0.0
        %v725 = vmax.f32 %v657, 0.0
        %v726 = vmax.f32 %v708, 0.0
        %v727 = vmax.f32 %v710, 0.0
        %v728 = vmax.f32 %v659, 0.0
        %v729 = vmax.f32 %v661, 0.0
        %v730 = vmax.f32 %v712, 0.0
        %v731 = vmax.f32 %v714, 0.0
        %v732 = vpack.c.bf16 %v720, %v716
        %v733 = vpack.c.bf16 %v721, %v717
        %v734 = vpack.c.bf16 %v722, %v718
        %v735 = vpack.c.bf16 %v723, %v719
        %v736 = vpack.c.bf16 %v728, %v724
        %v737 = vpack.c.bf16 %v729, %v725
        %v738 = vpack.c.bf16 %v730, %v726
        %v739 = vpack.c.bf16 %v731, %v727
        %740 = vmatprep.subr.bf16.mxu0 0
        %741 = vmatpush1.bf16.msra.mxu0 0
        %742 = vmatprep.subr.bf16.mxu0 0
        %743 = vmatpush1.bf16.msra.mxu0 0
        %744 = vmatprep.subr.bf16.mxu0 0
        %745 = vmatpush1.bf16.msra.mxu0 0
        %746 = vmatprep.subr.bf16.mxu0 0
        %747 = vmatpush1.bf16.msra.mxu0 0
        %748 = vmatprep.subr.bf16.mxu0 0
        %749 = vmatpush1.bf16.msra.mxu0 0
        %750 = vmatprep.subr.bf16.mxu0 0
        %751 = vmatpush1.bf16.msra.mxu0 0
        %752 = vmatprep.subr.bf16.mxu0 %v737
        %753 = vmatpush1.bf16.msra.mxu0 %v736
        %754 = vmatprep.subr.bf16.mxu0 %v733
        %755 = vmatpush1.bf16.msra.mxu0 %v732
        %756 = vmatprep.subr.bf16.mxu0 0
        %757 = vmatpush2.bf16.msra.mxu0 0
        %758 = vmatprep.subr.bf16.mxu0 0
        %759 = vmatpush2.bf16.msra.mxu0 0
        %760 = vmatprep.subr.bf16.mxu0 0
        %761 = vmatpush2.bf16.msra.mxu0 0
        %762 = vmatprep.subr.bf16.mxu0 0
        %763 = vmatpush2.bf16.msra.mxu0 0
        %764 = vmatprep.subr.bf16.mxu0 0
        %765 = vmatpush2.bf16.msra.mxu0 0
        %766 = vmatprep.subr.bf16.mxu0 0
        %767 = vmatpush2.bf16.msra.mxu0 0
        %768 = vmatprep.subr.bf16.mxu0 0
        %769 = vmatpush2.bf16.msra.mxu0 0
        %770 = vmatprep.subr.bf16.mxu0 0
        %771 = vmatpush2.bf16.msra.mxu0 0
        %772 = vmatprep.mubr.bf16.mxu0 0
        %773 = vmatmul.mubr.bf16.gmra.mxu0 %v501
        %v774 = vpop.f32.mrf.mxu0
        %v775 = vadd.f32 %v487, %v774
        %v776 = vpop.f32.mrf.mxu0
        %v777 = vadd.f32 %v487, %v776
        %v778 = vpop.f32.mrf.mxu0
        %v779 = vadd.f32 %v492, %v778
        %v780 = vpop.f32.mrf.mxu0
        %v781 = vadd.f32 %v492, %v780
        %782 = vdwg.mxu0
        %783 = vmatprep.subr.bf16.mxu0 0
        %784 = vmatpush1.bf16.msra.mxu0 0
        %785 = vmatprep.subr.bf16.mxu0 0
        %786 = vmatpush1.bf16.msra.mxu0 0
        %787 = vmatprep.subr.bf16.mxu0 0
        %788 = vmatpush1.bf16.msra.mxu0 0
        %789 = vmatprep.subr.bf16.mxu0 0
        %790 = vmatpush1.bf16.msra.mxu0 0
        %791 = vmatprep.subr.bf16.mxu0 0
        %792 = vmatpush1.bf16.msra.mxu0 0
        %793 = vmatprep.subr.bf16.mxu0 0
        %794 = vmatpush1.bf16.msra.mxu0 0
        %795 = vmatprep.subr.bf16.mxu0 %v739
        %796 = vmatpush1.bf16.msra.mxu0 %v738
        %797 = vmatprep.subr.bf16.mxu0 %v735
        %798 = vmatpush1.bf16.msra.mxu0 %v734
        %799 = vmatprep.subr.bf16.mxu0 0
        %800 = vmatpush2.bf16.msra.mxu0 0
        %801 = vmatprep.subr.bf16.mxu0 0
        %802 = vmatpush2.bf16.msra.mxu0 0
        %803 = vmatprep.subr.bf16.mxu0 0
        %804 = vmatpush2.bf16.msra.mxu0 0
        %805 = vmatprep.subr.bf16.mxu0 0
        %806 = vmatpush2.bf16.msra.mxu0 0
        %807 = vmatprep.subr.bf16.mxu0 0
        %808 = vmatpush2.bf16.msra.mxu0 0
        %809 = vmatprep.subr.bf16.mxu0 0
        %810 = vmatpush2.bf16.msra.mxu0 0
        %811 = vmatprep.subr.bf16.mxu0 0
        %812 = vmatpush2.bf16.msra.mxu0 0
        %813 = vmatprep.subr.bf16.mxu0 0
        %814 = vmatpush2.bf16.msra.mxu0 0
        %815 = vmatprep.mubr.bf16.mxu0 0
        %816 = vmatmul.mubr.bf16.gmra.mxu0 %v501
        %v817 = vpop.f32.mrf.mxu0
        %v818 = vadd.f32 %v487, %v817
        %v819 = vpop.f32.mrf.mxu0
        %v820 = vadd.f32 %v487, %v819
        %v821 = vpop.f32.mrf.mxu0
        %v822 = vadd.f32 %v492, %v821
        %v823 = vpop.f32.mrf.mxu0
        %v824 = vadd.f32 %v492, %v823
        %825 = vdwg.mxu0
        %s826 = scalar_lea.vmem %s287, 64 [#allocation3]
        %827 = vst [vmem:[%s826] sm:$0xff] %v775
        %828 = vst [vmem:[%s826 + $0x8] sm:$0xff] %v777
        %829 = vst [vmem:[%s826 + $0x10] sm:$0xff] %v818
        %830 = vst [vmem:[%s826 + $0x18] sm:$0xff] %v820
        %831 = vst [vmem:[%s826 + $0x20] sm:$0xff] %v779
        %832 = vst [vmem:[%s826 + $0x28] sm:$0xff] %v781
        %833 = vst [vmem:[%s826 + $0x30] sm:$0xff] %v822
        %834 = vst [vmem:[%s826 + $0x38] sm:$0xff] %v824
        %s835 = sand.u32 %s150, 1
        %s836 = sand.u32 %s150, 1
        %s837 = smul.addr %s836, 128
        %s838 = scalar_lea.vmem [#allocation3], %s837
        // Predicated region
        $region64: #{ffn_forward.1} parent=58 // pred_check
          %p839 = pneg %p160
        $region65: #{ffn_forward.1} parent=58 // pred_check_branch
          %841 = sbr.rel (%p839) target = $region67
        $region66: #{ffn_forward.1} parent=58 // pred_region
          %s842 = smul.u32 2, %s20
          %s843 = smul.u32 4, %s21
          %s844 = smul.addr %s842, 16
          %s845 = sadd.s32 %s843, %s844
          %s846 = smul.addr %s845, 8
          %s847 = scalar_lea.vmem %s5, %s846
          // Predicated region
          $region68: #{ffn_forward.1} parent=66 // pred_check
            _
          $region69: #{ffn_forward.1} parent=66 // pred_check_branch
            %849 = sbr.rel (0) target = $region71
          $region70: #{ffn_forward.1} parent=66 // pred_region
            // Predicated region
            $region72: #{ffn_forward.1} parent=70 // pred_check
              _
            $region73: #{ffn_forward.1} parent=70 // pred_check_branch
              %851 = sbr.rel (0) target = $region75
            $region74: #{ffn_forward.1} parent=70 // pred_region
              loop: start=0, step=1, limit=1
              $region76: #{ffn_forward.1} parent=74 // loop_pre_header
                _
              $region77: #{ffn_forward.1} parent=74 // loop_header
                %s853 = sphi 0, %s857
                %p854 = scmp.ge.s32.totalorder %s853, 1
                %s858 = sphi %s838, %s838
                %s859 = sphi %s847, %s847
              $region78: #{ffn_forward.1} parent=74 // loop_header_branch
                %856 = sbr.rel (%p854) target = $region82
              $region79: #{ffn_forward.1} parent=74 // loop_body
                %v860 = vld [vmem:[%s858] sm:$0xff]
                %861 = vst [vmem:[%s859] sm:$0xff] %v860
                %v862 = vld [vmem:[%s858 + $0x8] sm:$0xff]
                %863 = vst [vmem:[%s859 + $0x8] sm:$0xff] %v862
                %v864 = vld [vmem:[%s858 + $0x10] sm:$0xff]
                %865 = vst [vmem:[%s859 + $0x10] sm:$0xff] %v864
                %v866 = vld [vmem:[%s858 + $0x18] sm:$0xff]
                %867 = vst [vmem:[%s859 + $0x18] sm:$0xff] %v866
                %v868 = vld [vmem:[%s858 + $0x20] sm:$0xff]
                %869 = vst [vmem:[%s859 + $0x40] sm:$0xff] %v868
                %v870 = vld [vmem:[%s858 + $0x28] sm:$0xff]
                %871 = vst [vmem:[%s859 + $0x48] sm:$0xff] %v870
                %v872 = vld [vmem:[%s858 + $0x30] sm:$0xff]
                %873 = vst [vmem:[%s859 + $0x50] sm:$0xff] %v872
                %v874 = vld [vmem:[%s858 + $0x38] sm:$0xff]
                %875 = vst [vmem:[%s859 + $0x58] sm:$0xff] %v874
                %v876 = vld [vmem:[%s858 + $0x40] sm:$0xff]
                %877 = vst [vmem:[%s859 + $0x80] sm:$0xff] %v876
                %v878 = vld [vmem:[%s858 + $0x48] sm:$0xff]
                %879 = vst [vmem:[%s859 + $0x88] sm:$0xff] %v878
                %v880 = vld [vmem:[%s858 + $0x50] sm:$0xff]
                %881 = vst [vmem:[%s859 + $0x90] sm:$0xff] %v880
                %v882 = vld [vmem:[%s858 + $0x58] sm:$0xff]
                %883 = vst [vmem:[%s859 + $0x98] sm:$0xff] %v882
                %v884 = vld [vmem:[%s858 + $0x60] sm:$0xff]
                %885 = vst [vmem:[%s859 + $0xc0] sm:$0xff] %v884
                %v886 = vld [vmem:[%s858 + $0x68] sm:$0xff]
                %887 = vst [vmem:[%s859 + $0xc8] sm:$0xff] %v886
                %v888 = vld [vmem:[%s858 + $0x70] sm:$0xff]
                %889 = vst [vmem:[%s859 + $0xd0] sm:$0xff] %v888
                %v890 = vld [vmem:[%s858 + $0x78] sm:$0xff]
                %891 = vst [vmem:[%s859 + $0xd8] sm:$0xff] %v890
              $region80: #{ffn_forward.1} parent=74 // loop_footer
                %s857 = sadd.s32 1, %s853
              $region81: #{ffn_forward.1} parent=74 // loop_footer_branch
                %852 = sbr.rel target = $region77
              $region82: #{ffn_forward.1} parent=74 // loop_exit
                _
            $region75: #{ffn_forward.1} parent=70 // pred_fallthru
              _
            // Predicated region
            $region83: #{ffn_forward.1} parent=70 // pred_check
              _
            $region84: #{ffn_forward.1} parent=70 // pred_check_branch
              %893 = sbr.rel target = $region86
            $region85: #{ffn_forward.1} parent=70 // pred_region
              _
            $region86: #{ffn_forward.1} parent=70 // pred_fallthru
              _
          $region71: #{ffn_forward.1} parent=66 // pred_fallthru
            _
          %894 = vnop
        $region67: #{ffn_forward.1} parent=58 // pred_fallthru
          _
      $region59: #{ffn_forward.1} parent=5 // pred_fallthru
        _
      %p895 = scmp.le.s32.totalorder 2, %s11
      // Predicated region
      $region87: #{ffn_forward.1} parent=5 // pred_check
        %p896 = pneg %p895
      $region88: #{ffn_forward.1} parent=5 // pred_check_branch
        %898 = sbr.rel (%p896) target = $region90
      $region89: #{ffn_forward.1} parent=5 // pred_region
        %s899 = ssub.s32 %s11, 2
        // Predicated region
        $region91: #{ffn_forward.1} parent=89 // pred_check
          %p900 = pneg %p166
        $region92: #{ffn_forward.1} parent=89 // pred_check_branch
          %902 = sbr.rel (%p900) target = $region94
        $region93: #{ffn_forward.1} parent=89 // pred_region
          %s903 = sand.u32 %s151, 1
          %s904 = sand.u32 %s151, 1
          %s905 = smul.addr %s904, 128
          %s906 = scalar_lea.vmem [#allocation3], %s905
        $region94: #{ffn_forward.1} parent=89 // pred_fallthru
          _
      $region90: #{ffn_forward.1} parent=5 // pred_fallthru
        _
    $region6: #{ffn_forward.1} parent=1 // loop_footer
      %s15 = sadd.s32 1, %s11
    $region7: #{ffn_forward.1} parent=1 // loop_footer_branch
      %10 = sbr.rel target = $region3
    $region8: #{ffn_forward.1} parent=1 // loop_exit
      _

</llo_original>
